<compile_context>
chip_gen: v7x
topology: tpu7x:2x2x1
jax: 0.10.0
libtpu: 0.0.40
codegen_flags: <defaults>
</compile_context>

<pallas_src>
import functools

import jax
import jax.numpy as jnp
from jax import lax
from jax.experimental import pallas as pl
from jax.experimental.pallas import tpu as pltpu


def _round_up(x, m):
    return ((x + m - 1) // m) * m


def _vmem_capacity_bytes():
    try:
        return int(pltpu.get_tpu_info().vmem_capacity_bytes)
    except Exception:
        return 64 << 20  # conservative (v7x-sized) fallback


def _const_block_spec(block_shape, index_map):
    """BlockSpec for constant-index operands: single pipeline buffer."""
    try:
        return pl.BlockSpec(block_shape, index_map, pipeline_mode=pl.Buffered(1))
    except Exception:  # older jax without pipeline_mode / Buffered
        return pl.BlockSpec(block_shape, index_map)


def _downsample_kernel(main_ref, halo_ref, wl_ref, wp_ref, b_ref, o_ref):
    # main_ref: (TH, 2, Wo, 2C) bf16  -- padded rows (2*ho, 2*ho+1) per out row
    # halo_ref: (1, Wo, 2C)     bf16  -- even row of the next row pair
    # wl_ref:   (3, C, TN)      bf16  -- kw=0 tap weights, per kh
    # wp_ref:   (3, 2C, TN)     bf16  -- kw=1,2 tap weights, per kh
    # b_ref:    (1, TN)         f32
    # o_ref:    (TH, Wo, TN)
    th, _, wo, c2 = main_ref.shape
    c = c2 // 2
    tn = o_ref.shape[-1]

    m = main_ref[...]
    r0 = m[:, 0]                       # kh=0 rows  (TH, Wo, 2C)
    r1 = m[:, 1]                       # kh=1 rows
    halo = halo_ref[...]
    if th > 1:
        r2 = jnp.concatenate([r0[1:], halo], axis=0)   # kh=2 rows
    else:
        r2 = halo

    rows = th * wo
    acc = jnp.zeros((rows, tn), jnp.float32)
    for kh, rk in enumerate((r0, r1, r2)):
        # kw = 1, 2 : the (even, odd) column pair of this output column.
        acc = acc + jnp.dot(rk.reshape(rows, c2), wp_ref[kh],
                            preferred_element_type=jnp.float32)
        # kw = 0 : odd column of the previous pair; zero at the left edge is
        # exactly the conv's width padding.
        odd = rk[:, :, c:]
        if wo > 1:
            left = jnp.concatenate(
                [jnp.zeros_like(odd[:, :1]), odd[:, :wo - 1]], axis=1)
        else:
            left = jnp.zeros_like(odd)
        acc = acc + jnp.dot(left.reshape(rows, c), wl_ref[kh],
                            preferred_element_type=jnp.float32)

    out = acc + b_ref[...]
    o_ref[...] = out.reshape(th, wo, tn).astype(o_ref.dtype)


def _pick_tiles(C, Cp, Ho, Wo, out_bytes, budget):
    """Row tile TH, out-channel tile TN, and whether weights are single-buffered."""
    per_n = 9 * C * 2 + 4              # bf16 weight column + f32 bias per out chan
    if Cp * per_n <= budget // 2:
        tn, w_resident, single_w = Cp, Cp * per_n, True
    else:
        # Weights too big to stay fully resident: tile Cout instead of ever
        # shrinking the row (M) tile (never starve the MXU on M).
        tn = min(Cp, max(128, ((budget // 4) // per_n) // 128 * 128))
        w_resident, single_w = 2 * tn * per_n, False
    # Largest row tile fitting the rest (double-buffered in/out + temporaries).
    per_row = Wo * (48 * C + tn * (2 * out_bytes + 6))
    rem = max(budget - w_resident, budget // 8)
    th = int(max(1, min(Ho, rem // max(per_row, 1))))
    if Wo < 2048:
        th = min(th, max(1, 2048 // Wo))          # keep per-step blocks sane
    th = min(Ho, max(th, -(-256 // Wo)))          # prefer >=256 MXU rows per tile
    if Ho % th:                                   # prefer a divisor of Ho
        for cand in range(th, 0, -1):
            if Ho % cand == 0:
                if cand * 2 >= th:
                    th = cand
                break
    return th, tn, single_w


@functools.partial(jax.jit, static_argnames=("kernel_size", "factor"))
def downsample_block2d(x_nchw, weight, bias, *, kernel_size=3, factor=2):
    """Forward of DownSampleBlock2D: (B,C,H,W) -> (B,C,H/2,W/2)."""
    B, C, H, W = x_nchw.shape
    assert kernel_size == 3 and factor == 2, (
        "fused kernel assumes the module defaults: 3x3, stride 2, padding 1")
    assert H % 2 == 0 and W % 2 == 0, (H, W)
    Ho, Wo = H // 2, W // 2
    out_dtype = x_nchw.dtype
    out_bytes = jnp.dtype(out_dtype).itemsize
    Cp = _round_up(C, 128)             # lane-dense output stores
    C2 = 2 * C

    # ---- layout glue (one fused HBM pass): NCHW -> NHWC, bf16, one zero row
    # top/bottom, then pair rows and columns so the stride-2 selection becomes
    # an even/odd index inside the kernel.  Note: bf16 operands / f32 MXU
    # accumulation (inference-grade numerics).
    x = jnp.transpose(x_nchw, (0, 2, 3, 1)).astype(jnp.bfloat16)
    xp = jnp.pad(x, ((0, 0), (1, 1), (0, 0), (0, 0)))
    xr = xp.reshape(B, Ho + 1, 2, Wo, C2)
    # xr[b, p, s, wo, 0:C]  = padded row 2p+s, column 2*wo
    # xr[b, p, s, wo, C:2C] = padded row 2p+s, column 2*wo+1

    # ---- weights: (Cout, Cin, 3, 3) -> per-kh tap matrices, Cout padded to Cp.
    wt = jnp.transpose(weight, (2, 3, 1, 0)).astype(jnp.bfloat16)   # (3,3,Cin,Cout)
    wl = wt[:, 0]                                                    # (3, C, Cout)
    wp = jnp.concatenate([wt[:, 1], wt[:, 2]], axis=1)               # (3, 2C, Cout)
    bb = bias.astype(jnp.float32).reshape(1, C)
    if Cp != C:
        wl = jnp.pad(wl, ((0, 0), (0, 0), (0, Cp - C)))
        wp = jnp.pad(wp, ((0, 0), (0, 0), (0, Cp - C)))
        bb = jnp.pad(bb, ((0, 0), (0, Cp - C)))

    # ---- tiling (generation-aware VMEM budget).
    vmem_cap = _vmem_capacity_bytes()
    budget = int(vmem_cap * 0.70)
    th, tn, single_w = _pick_tiles(C, Cp, Ho, Wo, out_bytes, budget)
    it = pl.cdiv(Ho, th)
    nt = pl.cdiv(Cp, tn)
    if B * nt * it < 2 and Ho >= 2:    # give both v7x TensorCores a share
        th = -(-Ho // 2)
        it = pl.cdiv(Ho, th)

    def weight_spec(block_shape, index_map):
        if single_w:
            return _const_block_spec(block_shape, index_map)
        return pl.BlockSpec(block_shape, index_map)

    cost = pl.CostEstimate(
        flops=2 * B * nt * it * th * Wo * 9 * C * tn,
        bytes_accessed=(B * nt * it * (th * 2 + 1) * Wo * C2 * 2
                        + B * nt * 9 * C * tn * 2
                        + B * nt * it * th * Wo * tn * out_bytes),
        transcendentals=0)

    out = pl.pallas_call(
        _downsample_kernel,
        out_shape=jax.ShapeDtypeStruct((B, Ho, Wo, Cp), out_dtype),
        grid=(B, nt, it),              # row-tile axis innermost -> weights stay put
        in_specs=[
            pl.BlockSpec((None, th, 2, Wo, C2),
                         lambda b, n, i: (b, i, 0, 0, 0)),
            pl.BlockSpec((None, 1, None, Wo, C2),
                         lambda b, n, i: (b, jnp.minimum((i + 1) * th, Ho), 0, 0, 0)),
            weight_spec((3, C, tn), lambda b, n, i: (0, 0, n)),
            weight_spec((3, C2, tn), lambda b, n, i: (0, 0, n)),
            weight_spec((1, tn), lambda b, n, i: (0, n)),
        ],
        out_specs=pl.BlockSpec((None, th, Wo, tn), lambda b, n, i: (b, i, 0, n)),
        compiler_params=pltpu.CompilerParams(
            dimension_semantics=("parallel", "parallel", "parallel"),
            vmem_limit_bytes=int(vmem_cap * 0.85)),
        cost_estimate=cost,
    )(xr, xr, wl, wp, bb)

    out = out[..., :C]                            # drop Cout lane padding
    return jnp.transpose(out, (0, 3, 1, 2))       # back to NCHW (module contract)


def _init_params(key, in_channels, kernel_size):
    # Deterministic init mimicking nn.Conv2d default (kaiming-uniform style).
    kw_key, b_key = jax.random.split(key)
    fan_in = in_channels * kernel_size * kernel_size
    bound = 1.0 / jnp.sqrt(fan_in)
    weight = jax.random.uniform(
        kw_key, (in_channels, in_channels, kernel_size, kernel_size),
        dtype=jnp.float32, minval=-bound, maxval=bound)
    bias = jax.random.uniform(
        b_key, (in_channels,), dtype=jnp.float32, minval=-bound, maxval=bound)
    return weight, bias


if __name__ == "__main__":
    key = jax.random.PRNGKey(0)
    x_key, p_key = jax.random.split(key)

    B, C, H, W = 2, 4, 16, 16
    kernel_size, factor = 3, 2

    x = jax.random.normal(x_key, (B, C, H, W), dtype=jnp.float32)
    weight, bias = _init_params(p_key, C, kernel_size)

    out = downsample_block2d(x, weight, bias,
                             kernel_size=kernel_size, factor=factor)
    out = jax.block_until_ready(out)
    assert out.shape == (B, C, H // factor, W // factor), out.shape

    # Pure-JAX f32 reference (XLA conv). Kernel uses bf16 operands with f32
    # accumulation, hence the loose tolerance.
    ref = lax.conv_general_dilated(
        x, weight,
        window_strides=(factor, factor),
        padding=[(1, 1), (1, 1)],
        dimension_numbers=("NCHW", "OIHW", "NCHW"),
    ) + bias.reshape(1, C, 1, 1)
    err = float(jnp.max(jnp.abs(out - ref)))
    assert err < 5e-2, err

    print("KERNEL_OK")
</pallas_src>

<mosaic_0001>
module attributes {stable_mosaic.version = 11 : i64} {
  func.func @_downsample_kernel(%arg0: i32, %arg1: i32, %arg2: i32, %arg3: memref<1x8x2x8x8xbf16, #tpu.memory_space<vmem>>, %arg4: memref<1x1x1x8x8xbf16, #tpu.memory_space<vmem>>, %arg5: memref<3x4x128xbf16, #tpu.memory_space<vmem>>, %arg6: memref<3x8x128xbf16, #tpu.memory_space<vmem>>, %arg7: memref<1x128xf32, #tpu.memory_space<vmem>>, %arg8: memref<1x8x8x128xf32, #tpu.memory_space<vmem>>) attributes {dimension_semantics = [#tpu.dimension_semantics<parallel>, #tpu.dimension_semantics<parallel>, #tpu.dimension_semantics<parallel>], iteration_bounds = array<i64: 2, 1, 1>, scalar_prefetch = 0 : i64, scratch_operands = 0 : i64, tpu.core_type = #tpu.core_type<tc>, window_params = [{transform_indices = @transform_0, window_bounds = array<i64: 1, 8, 2, 8, 8>}, {transform_indices = @transform_1, window_bounds = array<i64: 1, 1, 1, 8, 8>}, {pipeline_mode = #tpu.pipeline_mode<synchronous>, transform_indices = @transform_2, window_bounds = array<i64: 3, 4, 128>}, {pipeline_mode = #tpu.pipeline_mode<synchronous>, transform_indices = @transform_3, window_bounds = array<i64: 3, 8, 128>}, {pipeline_mode = #tpu.pipeline_mode<synchronous>, transform_indices = @transform_4, window_bounds = array<i64: 1, 128>}, {transform_indices = @transform_5, window_bounds = array<i64: 1, 8, 8, 128>}]} {
    %c0 = arith.constant 0 : index
    %c0_0 = arith.constant 0 : index
    %c0_1 = arith.constant 0 : index
    %c0_2 = arith.constant 0 : index
    %c0_3 = arith.constant 0 : index
    %0 = vector.load %arg3[%c0, %c0_0, %c0_1, %c0_2, %c0_3] : memref<1x8x2x8x8xbf16, #tpu.memory_space<vmem>>, vector<1x8x2x8x8xbf16>
    %1 = vector.shape_cast %0 : vector<1x8x2x8x8xbf16> to vector<8x2x8x8xbf16>
    %2 = vector.extract_strided_slice %1 {offsets = [0, 0, 0, 0], sizes = [8, 1, 8, 8], strides = [1, 1, 1, 1]} : vector<8x2x8x8xbf16> to vector<8x1x8x8xbf16>
    %3 = vector.shape_cast %2 : vector<8x1x8x8xbf16> to vector<8x8x8xbf16>
    %4 = vector.extract_strided_slice %1 {offsets = [0, 1, 0, 0], sizes = [8, 1, 8, 8], strides = [1, 1, 1, 1]} : vector<8x2x8x8xbf16> to vector<8x1x8x8xbf16>
    %5 = vector.shape_cast %4 : vector<8x1x8x8xbf16> to vector<8x8x8xbf16>
    %c0_4 = arith.constant 0 : index
    %c0_5 = arith.constant 0 : index
    %c0_6 = arith.constant 0 : index
    %c0_7 = arith.constant 0 : index
    %c0_8 = arith.constant 0 : index
    %6 = vector.load %arg4[%c0_4, %c0_5, %c0_6, %c0_7, %c0_8] : memref<1x1x1x8x8xbf16, #tpu.memory_space<vmem>>, vector<1x1x1x8x8xbf16>
    %7 = vector.shape_cast %6 : vector<1x1x1x8x8xbf16> to vector<1x8x8xbf16>
    %8 = vector.extract_strided_slice %3 {offsets = [1, 0, 0], sizes = [7, 8, 8], strides = [1, 1, 1]} : vector<8x8x8xbf16> to vector<7x8x8xbf16>
    %9 = tpu.concatenate %8, %7 in 0 : vector<7x8x8xbf16>, vector<1x8x8xbf16> -> vector<8x8x8xbf16>
    %cst = arith.constant 0.000000e+00 : f32
    %10 = vector.broadcast %cst : f32 to vector<64x128xf32>
    %11 = vector.shape_cast %3 : vector<8x8x8xbf16> to vector<64x8xbf16>
    %c0_9 = arith.constant 0 : index
    %c0_10 = arith.constant 0 : index
    %c0_11 = arith.constant 0 : index
    %12 = vector.load %arg6[%c0_9, %c0_10, %c0_11] : memref<3x8x128xbf16, #tpu.memory_space<vmem>>, vector<1x8x128xbf16>
    %13 = vector.shape_cast %12 : vector<1x8x128xbf16> to vector<8x128xbf16>
    %cst_12 = arith.constant dense<0.000000e+00> : vector<64x128xf32>
    %14 = tpu.matmul %11, %13, %cst_12 {dimension_numbers = #tpu.dot_dimension_numbers<[1], [0], [0], [1], [0, 0, 1, 1], [], []>} : vector<64x8xbf16>, vector<8x128xbf16>, vector<64x128xf32> -> vector<64x128xf32>
    %15 = arith.addf %10, %14 : vector<64x128xf32>
    %16 = vector.extract_strided_slice %3 {offsets = [0, 0, 4], sizes = [8, 8, 4], strides = [1, 1, 1]} : vector<8x8x8xbf16> to vector<8x8x4xbf16>
    %cst_13 = arith.constant 0.000000e+00 : bf16
    %17 = vector.broadcast %cst_13 : bf16 to vector<8x1x4xbf16>
    %18 = vector.extract_strided_slice %16 {offsets = [0, 0, 0], sizes = [8, 7, 4], strides = [1, 1, 1]} : vector<8x8x4xbf16> to vector<8x7x4xbf16>
    %19 = tpu.concatenate %17, %18 in 1 : vector<8x1x4xbf16>, vector<8x7x4xbf16> -> vector<8x8x4xbf16>
    %20 = vector.shape_cast %19 : vector<8x8x4xbf16> to vector<64x4xbf16>
    %c0_14 = arith.constant 0 : index
    %c0_15 = arith.constant 0 : index
    %c0_16 = arith.constant 0 : index
    %21 = vector.load %arg5[%c0_14, %c0_15, %c0_16] : memref<3x4x128xbf16, #tpu.memory_space<vmem>>, vector<1x4x128xbf16>
    %22 = vector.shape_cast %21 : vector<1x4x128xbf16> to vector<4x128xbf16>
    %cst_17 = arith.constant dense<0.000000e+00> : vector<64x128xf32>
    %23 = tpu.matmul %20, %22, %cst_17 {dimension_numbers = #tpu.dot_dimension_numbers<[1], [0], [0], [1], [0, 0, 1, 1], [], []>} : vector<64x4xbf16>, vector<4x128xbf16>, vector<64x128xf32> -> vector<64x128xf32>
    %24 = arith.addf %15, %23 : vector<64x128xf32>
    %25 = vector.shape_cast %5 : vector<8x8x8xbf16> to vector<64x8xbf16>
    %c1 = arith.constant 1 : index
    %c0_18 = arith.constant 0 : index
    %c0_19 = arith.constant 0 : index
    %26 = vector.load %arg6[%c1, %c0_18, %c0_19] : memref<3x8x128xbf16, #tpu.memory_space<vmem>>, vector<1x8x128xbf16>
    %27 = vector.shape_cast %26 : vector<1x8x128xbf16> to vector<8x128xbf16>
    %cst_20 = arith.constant dense<0.000000e+00> : vector<64x128xf32>
    %28 = tpu.matmul %25, %27, %cst_20 {dimension_numbers = #tpu.dot_dimension_numbers<[1], [0], [0], [1], [0, 0, 1, 1], [], []>} : vector<64x8xbf16>, vector<8x128xbf16>, vector<64x128xf32> -> vector<64x128xf32>
    %29 = arith.addf %24, %28 : vector<64x128xf32>
    %30 = vector.extract_strided_slice %5 {offsets = [0, 0, 4], sizes = [8, 8, 4], strides = [1, 1, 1]} : vector<8x8x8xbf16> to vector<8x8x4xbf16>
    %cst_21 = arith.constant 0.000000e+00 : bf16
    %31 = vector.broadcast %cst_21 : bf16 to vector<8x1x4xbf16>
    %32 = vector.extract_strided_slice %30 {offsets = [0, 0, 0], sizes = [8, 7, 4], strides = [1, 1, 1]} : vector<8x8x4xbf16> to vector<8x7x4xbf16>
    %33 = tpu.concatenate %31, %32 in 1 : vector<8x1x4xbf16>, vector<8x7x4xbf16> -> vector<8x8x4xbf16>
    %34 = vector.shape_cast %33 : vector<8x8x4xbf16> to vector<64x4xbf16>
    %c1_22 = arith.constant 1 : index
    %c0_23 = arith.constant 0 : index
    %c0_24 = arith.constant 0 : index
    %35 = vector.load %arg5[%c1_22, %c0_23, %c0_24] : memref<3x4x128xbf16, #tpu.memory_space<vmem>>, vector<1x4x128xbf16>
    %36 = vector.shape_cast %35 : vector<1x4x128xbf16> to vector<4x128xbf16>
    %cst_25 = arith.constant dense<0.000000e+00> : vector<64x128xf32>
    %37 = tpu.matmul %34, %36, %cst_25 {dimension_numbers = #tpu.dot_dimension_numbers<[1], [0], [0], [1], [0, 0, 1, 1], [], []>} : vector<64x4xbf16>, vector<4x128xbf16>, vector<64x128xf32> -> vector<64x128xf32>
    %38 = arith.addf %29, %37 : vector<64x128xf32>
    %39 = vector.shape_cast %9 : vector<8x8x8xbf16> to vector<64x8xbf16>
    %c2 = arith.constant 2 : index
    %c0_26 = arith.constant 0 : index
    %c0_27 = arith.constant 0 : index
    %40 = vector.load %arg6[%c2, %c0_26, %c0_27] : memref<3x8x128xbf16, #tpu.memory_space<vmem>>, vector<1x8x128xbf16>
    %41 = vector.shape_cast %40 : vector<1x8x128xbf16> to vector<8x128xbf16>
    %cst_28 = arith.constant dense<0.000000e+00> : vector<64x128xf32>
    %42 = tpu.matmul %39, %41, %cst_28 {dimension_numbers = #tpu.dot_dimension_numbers<[1], [0], [0], [1], [0, 0, 1, 1], [], []>} : vector<64x8xbf16>, vector<8x128xbf16>, vector<64x128xf32> -> vector<64x128xf32>
    %43 = arith.addf %38, %42 : vector<64x128xf32>
    %44 = vector.extract_strided_slice %9 {offsets = [0, 0, 4], sizes = [8, 8, 4], strides = [1, 1, 1]} : vector<8x8x8xbf16> to vector<8x8x4xbf16>
    %cst_29 = arith.constant 0.000000e+00 : bf16
    %45 = vector.broadcast %cst_29 : bf16 to vector<8x1x4xbf16>
    %46 = vector.extract_strided_slice %44 {offsets = [0, 0, 0], sizes = [8, 7, 4], strides = [1, 1, 1]} : vector<8x8x4xbf16> to vector<8x7x4xbf16>
    %47 = tpu.concatenate %45, %46 in 1 : vector<8x1x4xbf16>, vector<8x7x4xbf16> -> vector<8x8x4xbf16>
    %48 = vector.shape_cast %47 : vector<8x8x4xbf16> to vector<64x4xbf16>
    %c2_30 = arith.constant 2 : index
    %c0_31 = arith.constant 0 : index
    %c0_32 = arith.constant 0 : index
    %49 = vector.load %arg5[%c2_30, %c0_31, %c0_32] : memref<3x4x128xbf16, #tpu.memory_space<vmem>>, vector<1x4x128xbf16>
    %50 = vector.shape_cast %49 : vector<1x4x128xbf16> to vector<4x128xbf16>
    %cst_33 = arith.constant dense<0.000000e+00> : vector<64x128xf32>
    %51 = tpu.matmul %48, %50, %cst_33 {dimension_numbers = #tpu.dot_dimension_numbers<[1], [0], [0], [1], [0, 0, 1, 1], [], []>} : vector<64x4xbf16>, vector<4x128xbf16>, vector<64x128xf32> -> vector<64x128xf32>
    %52 = arith.addf %43, %51 : vector<64x128xf32>
    %c0_34 = arith.constant 0 : index
    %c0_35 = arith.constant 0 : index
    %53 = vector.load %arg7[%c0_34, %c0_35] : memref<1x128xf32, #tpu.memory_space<vmem>>, vector<1x128xf32>
    %54 = vector.broadcast %53 : vector<1x128xf32> to vector<64x128xf32>
    %55 = arith.addf %52, %54 : vector<64x128xf32>
    %56 = vector.shape_cast %55 : vector<64x128xf32> to vector<8x8x128xf32>
    %c0_36 = arith.constant 0 : index
    %c0_37 = arith.constant 0 : index
    %c0_38 = arith.constant 0 : index
    %c0_39 = arith.constant 0 : index
    %57 = vector.load %arg8[%c0_36, %c0_37, %c0_38, %c0_39] : memref<1x8x8x128xf32, #tpu.memory_space<vmem>>, vector<1x8x8x128xf32>
    %58 = vector.shape_cast %57 : vector<1x8x8x128xf32> to vector<8x8x128xf32>
    %59 = vector.shape_cast %56 : vector<8x8x128xf32> to vector<1x8x8x128xf32>
    tpu.vector_store %arg8[%c0_36, %c0_37, %c0_38, %c0_39], %59 {strides = array<i32>} : memref<1x8x8x128xf32, #tpu.memory_space<vmem>>, vector<1x8x8x128xf32>,
    return
  }
  func.func @transform_0(%arg0: i32, %arg1: i32, %arg2: i32) -> (i32, i32, i32, i32, i32) {
    %c0_i32 = arith.constant 0 : i32
    %c0_i32_0 = arith.constant 0 : i32
    %c0_i32_1 = arith.constant 0 : i32
    %c0_i32_2 = arith.constant 0 : i32
    return %arg0, %arg2, %c0_i32, %c0_i32_0, %c0_i32_1 : i32, i32, i32, i32, i32
  }
  func.func @transform_1(%arg0: i32, %arg1: i32, %arg2: i32) -> (i32, i32, i32, i32, i32) {
    %c1_i32 = arith.constant 1 : i32
    %0 = arith.addi %arg2, %c1_i32 : i32
    %c8_i32 = arith.constant 8 : i32
    %1 = arith.muli %0, %c8_i32 : i32
    %c8_i32_0 = arith.constant 8 : i32
    %2 = arith.minsi %1, %c8_i32_0 : i32
    %c0_i32 = arith.constant 0 : i32
    %c0_i32_1 = arith.constant 0 : i32
    %c0_i32_2 = arith.constant 0 : i32
    %c0_i32_3 = arith.constant 0 : i32
    return %arg0, %2, %c0_i32, %c0_i32_1, %c0_i32_2 : i32, i32, i32, i32, i32
  }
  func.func @transform_2(%arg0: i32, %arg1: i32, %arg2: i32) -> (i32, i32, i32) {
    %c0_i32 = arith.constant 0 : i32
    %c0_i32_0 = arith.constant 0 : i32
    %c0_i32_1 = arith.constant 0 : i32
    return %c0_i32, %c0_i32_0, %arg1 : i32, i32, i32
  }
  func.func @transform_3(%arg0: i32, %arg1: i32, %arg2: i32) -> (i32, i32, i32) {
    %c0_i32 = arith.constant 0 : i32
    %c0_i32_0 = arith.constant 0 : i32
    %c0_i32_1 = arith.constant 0 : i32
    return %c0_i32, %c0_i32_0, %arg1 : i32, i32, i32
  }
  func.func @transform_4(%arg0: i32, %arg1: i32, %arg2: i32) -> (i32, i32) {
    %c0_i32 = arith.constant 0 : i32
    %c0_i32_0 = arith.constant 0 : i32
    return %c0_i32, %arg1 : i32, i32
  }
  func.func @transform_5(%arg0: i32, %arg1: i32, %arg2: i32) -> (i32, i32, i32, i32) {
    %c0_i32 = arith.constant 0 : i32
    %c0_i32_0 = arith.constant 0 : i32
    return %arg0, %arg2, %c0_i32, %arg1 : i32, i32, i32, i32
  }
}

</mosaic_0001>

<llo_original>
// kernel: downsample_block2d.1
$region0: #{downsample_block2d.1}
  #allocation0 [shape = 'u32[]', space=smem, size = 0x4, offset = 0x4, fixed_abs, tag = 'smem constant byte address 0x4 - core index']
  #allocation1 [shape = 'u32[144,128]{1,0:T(1,128)}', space=vmem, size = 0x12000, scoped, tag = 'internal scratch']
  %s0 = inlined_call_operand.vmem [shape: bf16[2,9,2,8,8], index: 0, kind: input, shape index: {}, may-alias: {0,1}]
  %s1 = inlined_call_operand.vmem [shape: bf16[2,9,2,8,8], index: 1, kind: input, shape index: {}, may-alias: {0,1}]
  %s2 = inlined_call_operand.vmem [shape: bf16[3,4,128], index: 2, kind: input, shape index: {}]
  %s3 = inlined_call_operand.vmem [shape: bf16[3,8,128], index: 3, kind: input, shape index: {}]
  %s4 = inlined_call_operand.vmem [shape: f32[1,128], index: 4, kind: input, shape index: {}]
  %s5 = inlined_call_operand.vmem [shape: f32[2,8,8,128], index: 5, kind: output, shape index: {}]
  %s6 = sld [smem:[#allocation0]]
  $region53: #{downsample_block2d.1} parent=0
    _
  %s8 = ssub.s32 1, %s6
  %s9 = scalar_select 0, %s8, %s6
  loop: start=0, step=1, limit=4
  $region2: #{downsample_block2d.1} parent=0 // loop_pre_header
    _
  $region3: #{downsample_block2d.1} parent=0 // loop_header
    %s11 = sphi 0, %s15
    %p12 = scmp.ge.s32.totalorder %s11, 4
    %s18 = sphi 0, %s37
    %s19 = sphi 0, %s33
    %s20 = sphi 0, %s29
    %s21 = sphi 0, %s18
    %s22 = sphi 0, %s19
    %s23 = sphi 0, %s20
    %s24 = sphi 0, %s21
    %s25 = sphi 0, %s22
    %s26 = sphi 0, %s23
    %s42 = sphi 0, %s44
    %s45 = sphi 0, %s42
    %s46 = sphi 0, %s45
    %s62 = sphi 0, %s46
    %s78 = sphi 0, %s80
    %s81 = sphi 0, %s78
    %s82 = sphi 0, %s81
    %s98 = sphi 0, %s82
    %s104 = sphi 0, %s106
    %s107 = sphi 0, %s104
    %s108 = sphi 0, %s107
    %s124 = sphi 0, %s108
    %s130 = sphi 0, %s132
    %s133 = sphi 0, %s130
    %s134 = sphi 0, %s133
    %s150 = sphi 0, %s134
    %s156 = sphi 0, %s158
    %s159 = sphi 0, %s156
    %s160 = sphi 0, %s159
    %s176 = sphi 0, %s160
    %s186 = sphi 0, %s188
    %s189 = sphi 0, %s186
    %s190 = sphi 0, %s189
    %s206 = sphi 0, %s190
  $region4: #{downsample_block2d.1} parent=0 // loop_header_branch
    %14 = sbr.rel (%p12) target = $region8
  $region5: #{downsample_block2d.1} parent=0 // loop_body
    %s16 = ssub.s32 %s11, 1
    %s17 = ssub.s32 %s11, 2
    %s27 = sadd.s32 1, %s20
    %p28 = scmp.ge.s32.totalorder %s27, 1
    %s29 = scalar_select %p28, 0, %s27
    %s30 = sadd.s32 1, %s19
    %s31 = scalar_select %p28, %s30, %s19
    %p32 = scmp.ge.s32.totalorder %s31, 1
    %s33 = scalar_select %p32, 0, %s31
    %s34 = sadd.s32 1, %s18
    %s35 = scalar_select %p32, %s34, %s18
    %p36 = scmp.ge.s32.totalorder %s35, 2
    %s37 = scalar_select %p36, 0, %s35
    %s38 = ssub.s32 %s18, %s37
    %s39 = ssub.s32 %s20, %s29
    %s40 = sor.u32 %s38, %s39
    %p41 = scmp.eq.s32.totalorder %s40, 0
    %s43 = sadd.s32 %s42, 1
    %s44 = scalar_select %p41, %s42, %s43
    %p47 = pneg %p41
    %p48 = scmp.eq.s32.totalorder %s11, 1
    %p49 = por %p47, %p48
    %p50 = scmp.ne.s32.totalorder %s42, %s45
    %p51 = scmp.eq.s32.totalorder %s11, 0
    %p52 = por %p50, %p51
    %p53 = scmp.ne.s32.totalorder %s42, %s45
    %p54 = scmp.eq.s32.totalorder %s16, 1
    %p55 = por %p53, %p54
    %p56 = scmp.ne.s32.totalorder %s45, %s46
    %p57 = scmp.eq.s32.totalorder %s16, 0
    %p58 = por %p56, %p57
    %p59 = scmp.ne.s32.totalorder %s45, %s46
    %p60 = scmp.eq.s32.totalorder %s17, 1
    %p61 = por %p59, %p60
    %p63 = scmp.ne.s32.totalorder %s46, %s62
    %p64 = scmp.eq.s32.totalorder %s17, 0
    %p65 = por %p63, %p64
    %s66 = sadd.s32 %s20, 1
    %s67 = smul.u32 %s66, 8
    %p68 = scmp.lt.s32.totalorder %s67, 8
    %s69 = scalar_select %p68, %s67, 8
    %s70 = sadd.s32 %s29, 1
    %s71 = smul.u32 %s70, 8
    %p72 = scmp.lt.s32.totalorder %s71, 8
    %s73 = scalar_select %p72, %s71, 8
    %s74 = ssub.s32 %s18, %s37
    %s75 = ssub.s32 %s69, %s73
    %s76 = sor.u32 %s74, %s75
    %p77 = scmp.eq.s32.totalorder %s76, 0
    %s79 = sadd.s32 %s78, 1
    %s80 = scalar_select %p77, %s78, %s79
    %p83 = pneg %p77
    %p84 = scmp.eq.s32.totalorder %s11, 1
    %p85 = por %p83, %p84
    %p86 = scmp.ne.s32.totalorder %s78, %s81
    %p87 = scmp.eq.s32.totalorder %s11, 0
    %p88 = por %p86, %p87
    %p89 = scmp.ne.s32.totalorder %s78, %s81
    %p90 = scmp.eq.s32.totalorder %s16, 1
    %p91 = por %p89, %p90
    %p92 = scmp.ne.s32.totalorder %s81, %s82
    %p93 = scmp.eq.s32.totalorder %s16, 0
    %p94 = por %p92, %p93
    %p95 = scmp.ne.s32.totalorder %s81, %s82
    %p96 = scmp.eq.s32.totalorder %s17, 1
    %p97 = por %p95, %p96
    %p99 = scmp.ne.s32.totalorder %s82, %s98
    %p100 = scmp.eq.s32.totalorder %s17, 0
    %p101 = por %p99, %p100
    %s102 = ssub.s32 %s19, %s33
    %p103 = scmp.eq.s32.totalorder %s102, 0
    %s105 = sadd.s32 %s104, 1
    %s106 = scalar_select %p103, %s104, %s105
    %p109 = pneg %p103
    %p110 = scmp.eq.s32.totalorder %s11, 1
    %p111 = por %p109, %p110
    %p112 = scmp.ne.s32.totalorder %s104, %s107
    %p113 = scmp.eq.s32.totalorder %s11, 0
    %p114 = por %p112, %p113
    %p115 = scmp.ne.s32.totalorder %s104, %s107
    %p116 = scmp.eq.s32.totalorder %s16, 1
    %p117 = por %p115, %p116
    %p118 = scmp.ne.s32.totalorder %s107, %s108
    %p119 = scmp.eq.s32.totalorder %s16, 0
    %p120 = por %p118, %p119
    %p121 = scmp.ne.s32.totalorder %s107, %s108
    %p122 = scmp.eq.s32.totalorder %s17, 1
    %p123 = por %p121, %p122
    %p125 = scmp.ne.s32.totalorder %s108, %s124
    %p126 = scmp.eq.s32.totalorder %s17, 0
    %p127 = por %p125, %p126
    %s128 = ssub.s32 %s19, %s33
    %p129 = scmp.eq.s32.totalorder %s128, 0
    %s131 = sadd.s32 %s130, 1
    %s132 = scalar_select %p129, %s130, %s131
    %p135 = pneg %p129
    %p136 = scmp.eq.s32.totalorder %s11, 1
    %p137 = por %p135, %p136
    %p138 = scmp.ne.s32.totalorder %s130, %s133
    %p139 = scmp.eq.s32.totalorder %s11, 0
    %p140 = por %p138, %p139
    %p141 = scmp.ne.s32.totalorder %s130, %s133
    %p142 = scmp.eq.s32.totalorder %s16, 1
    %p143 = por %p141, %p142
    %p144 = scmp.ne.s32.totalorder %s133, %s134
    %p145 = scmp.eq.s32.totalorder %s16, 0
    %p146 = por %p144, %p145
    %p147 = scmp.ne.s32.totalorder %s133, %s134
    %p148 = scmp.eq.s32.totalorder %s17, 1
    %p149 = por %p147, %p148
    %p151 = scmp.ne.s32.totalorder %s134, %s150
    %p152 = scmp.eq.s32.totalorder %s17, 0
    %p153 = por %p151, %p152
    %s154 = ssub.s32 %s19, %s33
    %p155 = scmp.eq.s32.totalorder %s154, 0
    %s157 = sadd.s32 %s156, 1
    %s158 = scalar_select %p155, %s156, %s157
    %p161 = pneg %p155
    %p162 = scmp.eq.s32.totalorder %s11, 1
    %p163 = por %p161, %p162
    %p164 = scmp.ne.s32.totalorder %s156, %s159
    %p165 = scmp.eq.s32.totalorder %s11, 0
    %p166 = por %p164, %p165
    %p167 = scmp.ne.s32.totalorder %s156, %s159
    %p168 = scmp.eq.s32.totalorder %s16, 1
    %p169 = por %p167, %p168
    %p170 = scmp.ne.s32.totalorder %s159, %s160
    %p171 = scmp.eq.s32.totalorder %s16, 0
    %p172 = por %p170, %p171
    %p173 = scmp.ne.s32.totalorder %s159, %s160
    %p174 = scmp.eq.s32.totalorder %s17, 1
    %p175 = por %p173, %p174
    %p177 = scmp.ne.s32.totalorder %s160, %s176
    %p178 = scmp.eq.s32.totalorder %s17, 0
    %p179 = por %p177, %p178
    %s180 = ssub.s32 %s18, %s37
    %s181 = ssub.s32 %s20, %s29
    %s182 = sor.u32 %s180, %s181
    %s183 = ssub.s32 %s19, %s33
    %s184 = sor.u32 %s182, %s183
    %p185 = scmp.eq.s32.totalorder %s184, 0
    %s187 = sadd.s32 %s186, 1
    %s188 = scalar_select %p185, %s186, %s187
    %p191 = pneg %p185
    %p192 = scmp.eq.s32.totalorder %s11, 1
    %p193 = por %p191, %p192
    %p194 = scmp.ne.s32.totalorder %s186, %s189
    %p195 = scmp.eq.s32.totalorder %s11, 0
    %p196 = por %p194, %p195
    %p197 = scmp.ne.s32.totalorder %s186, %s189
    %p198 = scmp.eq.s32.totalorder %s16, 1
    %p199 = por %p197, %p198
    %p200 = scmp.ne.s32.totalorder %s189, %s190
    %p201 = scmp.eq.s32.totalorder %s16, 0
    %p202 = por %p200, %p201
    %p203 = scmp.ne.s32.totalorder %s189, %s190
    %p204 = scmp.eq.s32.totalorder %s17, 1
    %p205 = por %p203, %p204
    %p207 = scmp.ne.s32.totalorder %s190, %s206
    %p208 = scmp.eq.s32.totalorder %s17, 0
    %p209 = por %p207, %p208
    %p210 = scmp.le.s32.totalorder 1, %s11
    %p211 = scmp.lt.s32.totalorder %s11, 3
    %p212 = pnand %p210, %p211
    %p213 = pneg %p212
    // Predicated region
    $region9: #{downsample_block2d.1} parent=5 // pred_check
      _
    $region10: #{downsample_block2d.1} parent=5 // pred_check_branch
      %215 = sbr.rel (%p212) target = $region12
    $region11: #{downsample_block2d.1} parent=5 // pred_region
      %s216 = ssub.s32 %s11, 1
      // Predicated region
      $region13: #{downsample_block2d.1} parent=11 // pred_check
        %p217 = pneg %p120
      $region14: #{downsample_block2d.1} parent=11 // pred_check_branch
        %219 = sbr.rel (%p217) target = $region16
      $region15: #{downsample_block2d.1} parent=11 // pred_region
        %p220 = scmp.lt.s32.totalorder %s22, 0
        %s221 = scalar_select %p220, %s22, 0
        %s222 = smul.addr %s221, 2
        %s223 = scalar_lea.vmem %s2, %s222
      $region16: #{downsample_block2d.1} parent=11 // pred_fallthru
        _
      // Predicated region
      $region17: #{downsample_block2d.1} parent=11 // pred_check
        %p224 = pneg %p146
      $region18: #{downsample_block2d.1} parent=11 // pred_check_branch
        %226 = sbr.rel (%p224) target = $region20
      $region19: #{downsample_block2d.1} parent=11 // pred_region
        %p227 = scmp.lt.s32.totalorder %s22, 0
        %s228 = scalar_select %p227, %s22, 0
        %s229 = smul.addr %s228, 4
        %s230 = scalar_lea.vmem %s3, %s229
      $region20: #{downsample_block2d.1} parent=11 // pred_fallthru
        _
      // Predicated region
      $region21: #{downsample_block2d.1} parent=11 // pred_check
        %p231 = pneg %p172
      $region22: #{downsample_block2d.1} parent=11 // pred_check_branch
        %233 = sbr.rel (%p231) target = $region24
      $region23: #{downsample_block2d.1} parent=11 // pred_region
        %p234 = scmp.lt.s32.totalorder %s22, 0
        %s235 = scalar_select %p234, %s22, 0
        %s236 = scalar_lea.vmem %s4, %s235
      $region24: #{downsample_block2d.1} parent=11 // pred_fallthru
        _
    $region12: #{downsample_block2d.1} parent=5 // pred_fallthru
      _
    %p237 = scmp.lt.s32.totalorder %s11, 2
    // Predicated region
    $region25: #{downsample_block2d.1} parent=5 // pred_check
      %p238 = pneg %p237
    $region26: #{downsample_block2d.1} parent=5 // pred_check_branch
      %240 = sbr.rel (%p238) target = $region28
    $region27: #{downsample_block2d.1} parent=5 // pred_region
      // Predicated region
      $region29: #{downsample_block2d.1} parent=27 // pred_check
        %p241 = pneg %p52
      $region30: #{downsample_block2d.1} parent=27 // pred_check_branch
        %243 = sbr.rel (%p241) target = $region32
      $region31: #{downsample_block2d.1} parent=27 // pred_region
        %s244 = smul.u32 8, %s20
        %s245 = ssub.s32 9, %s244
        %p246 = scmp.lt.s32.totalorder %s245, 8
        %s247 = scalar_select %p246, %s245, 8
        %s248 = smul.u32 64, %s247
        %s249 = smul.u32 %s248, 2
        %p250 = scmp.lt.s32.totalorder %s18, 1
        %s251 = scalar_select %p250, %s18, 1
        %p252 = scmp.lt.s32.totalorder %s244, 8
        %s253 = scalar_select %p252, %s244, 8
        %s254 = smul.addr %s253, 2
        %s255 = smul.addr %s251, 18
        %s256 = sadd.s32 %s254, %s255
        %s257 = smul.addr %s256, 4
        %s258 = scalar_lea.vmem %s0, %s257
        %s259 = smul.u32 8, %s20
        %s260 = ssub.s32 9, %s259
        %p261 = scmp.lt.s32.totalorder %s260, 8
        %s262 = scalar_select %p261, %s260, 8
        %s263 = smul.u32 64, %s262
        %s264 = smul.u32 %s263, 2
      $region32: #{downsample_block2d.1} parent=27 // pred_fallthru
        _
      // Predicated region
      $region33: #{downsample_block2d.1} parent=27 // pred_check
        %p265 = pneg %p88
      $region34: #{downsample_block2d.1} parent=27 // pred_check_branch
        %267 = sbr.rel (%p265) target = $region36
      $region35: #{downsample_block2d.1} parent=27 // pred_region
        %s268 = sadd.s32 %s20, 1
        %s269 = smul.u32 %s268, 8
        %p270 = scmp.lt.s32.totalorder %s269, 8
        %s271 = scalar_select %p270, %s269, 8
        %p272 = scmp.lt.s32.totalorder %s18, 1
        %s273 = scalar_select %p272, %s18, 1
        %p274 = scmp.lt.s32.totalorder %s271, 8
        %s275 = scalar_select %p274, %s271, 8
        %s276 = smul.addr %s275, 2
        %s277 = smul.addr %s273, 18
        %s278 = sadd.s32 %s276, %s277
        %s279 = smul.addr %s278, 4
        %s280 = scalar_lea.vmem %s1, %s279
        %s281 = sadd.s32 %s20, 1
        %s282 = smul.u32 %s281, 8
        %p283 = scmp.lt.s32.totalorder %s282, 8
        %s284 = scalar_select %p283, %s282, 8
      $region36: #{downsample_block2d.1} parent=27 // pred_fallthru
        _
    $region28: #{downsample_block2d.1} parent=5 // pred_fallthru
      _
    %p285 = scmp.le.s32.totalorder 1, %s11
    %p286 = scmp.lt.s32.totalorder %s11, 3
    %p287 = pnand %p285, %p286
    %p288 = pneg %p287
    // Predicated region
    $region37: #{downsample_block2d.1} parent=5 // pred_check
      _
    $region38: #{downsample_block2d.1} parent=5 // pred_check_branch
      %290 = sbr.rel (%p287) target = $region40
    $region39: #{downsample_block2d.1} parent=5 // pred_region
      %s291 = ssub.s32 %s11, 1
      %s292 = smul.u32 8, %s23
      %s293 = ssub.s32 9, %s292
      %p294 = scmp.lt.s32.totalorder %s293, 8
      %s295 = scalar_select %p294, %s293, 8
      %s296 = smul.u32 64, %s295
      %s297 = smul.u32 %s296, 2
      %p298 = scmp.lt.s32.totalorder %s21, 1
      %s299 = scalar_select %p298, %s21, 1
      %p300 = scmp.lt.s32.totalorder %s292, 8
      %s301 = scalar_select %p300, %s292, 8
      %s302 = smul.addr %s301, 2
      %s303 = smul.addr %s299, 18
      %s304 = sadd.s32 %s302, %s303
      %s305 = smul.addr %s304, 4
      %s306 = scalar_lea.vmem %s0, %s305
      %p307 = pneg %p58
      %p308 = pneg %p55
      %s309 = sadd.s32 %s23, 1
      %s310 = smul.u32 %s309, 8
      %p311 = scmp.lt.s32.totalorder %s310, 8
      %s312 = scalar_select %p311, %s310, 8
      %p313 = scmp.lt.s32.totalorder %s21, 1
      %s314 = scalar_select %p313, %s21, 1
      %p315 = scmp.lt.s32.totalorder %s312, 8
      %s316 = scalar_select %p315, %s312, 8
      %s317 = smul.addr %s316, 2
      %s318 = smul.addr %s314, 18
      %s319 = sadd.s32 %s317, %s318
      %s320 = smul.addr %s319, 4
      %s321 = scalar_lea.vmem %s1, %s320
      %p322 = pneg %p94
      %p323 = pneg %p91
      %p324 = scmp.lt.s32.totalorder %s22, 0
      %s325 = scalar_select %p324, %s22, 0
      %s326 = smul.addr %s325, 2
      %s327 = scalar_lea.vmem %s2, %s326
      %p328 = pneg %p120
      %p329 = pneg %p117
      %p330 = scmp.lt.s32.totalorder %s22, 0
      %s331 = scalar_select %p330, %s22, 0
      %s332 = smul.addr %s331, 4
      %s333 = scalar_lea.vmem %s3, %s332
      %p334 = pneg %p146
      %p335 = pneg %p143
      %p336 = scmp.lt.s32.totalorder %s22, 0
      %s337 = scalar_select %p336, %s22, 0
      %s338 = scalar_lea.vmem %s4, %s337
      %p339 = pneg %p172
      %p340 = pneg %p169
      %p341 = pneg %p202
      %p342 = pneg %p199
      %s343 = smul.u32 8, %s23
      %p344 = scmp.lt.s32.totalorder %s21, 1
      %s345 = scalar_select %p344, %s21, 1
      %p346 = scmp.lt.s32.totalorder %s343, 7
      %s347 = scalar_select %p346, %s343, 7
      %p348 = scmp.lt.s32.totalorder %s22, 0
      %s349 = scalar_select %p348, %s22, 0
      %s350 = sadd.s32 %s349, %s347
      %s351 = smul.addr %s345, 8
      %s352 = sadd.s32 %s350, %s351
      %s353 = smul.addr %s352, 8
      %s354 = scalar_lea.vmem %s5, %s353
      %s355 = smul.u32 8, %s23
      %s356 = ssub.s32 9, %s355
      %p357 = scmp.lt.s32.totalorder %s356, 8
      %s358 = scalar_select %p357, %s356, 8
      %s359 = smul.u32 64, %s358
      %s360 = smul.u32 %s359, 2
      %p361 = scmp.lt.s32.totalorder %s21, 1
      %s362 = scalar_select %p361, %s21, 1
      %p363 = scmp.lt.s32.totalorder %s355, 8
      %s364 = scalar_select %p363, %s355, 8
      %s365 = smul.addr %s364, 2
      %s366 = smul.addr %s362, 18
      %s367 = sadd.s32 %s365, %s366
      %s368 = smul.addr %s367, 4
      %s369 = scalar_lea.vmem %s0, %s368
      %s370 = smul.u32 8, %s23
      %s371 = ssub.s32 9, %s370
      %p372 = scmp.lt.s32.totalorder %s371, 8
      %s373 = scalar_select %p372, %s371, 8
      %s374 = smul.u32 64, %s373
      %s375 = smul.u32 %s374, 2
      %s376 = sadd.s32 %s23, 1
      %s377 = smul.u32 %s376, 8
      %p378 = scmp.lt.s32.totalorder %s377, 8
      %s379 = scalar_select %p378, %s377, 8
      %p380 = scmp.lt.s32.totalorder %s21, 1
      %s381 = scalar_select %p380, %s21, 1
      %p382 = scmp.lt.s32.totalorder %s379, 8
      %s383 = scalar_select %p382, %s379, 8
      %s384 = smul.addr %s383, 2
      %s385 = smul.addr %s381, 18
      %s386 = sadd.s32 %s384, %s385
      %s387 = smul.addr %s386, 4
      %s388 = scalar_lea.vmem %s1, %s387
      %s389 = sadd.s32 %s23, 1
      %s390 = smul.u32 %s389, 8
      %p391 = scmp.lt.s32.totalorder %s390, 8
      %s392 = scalar_select %p391, %s390, 8
      %p393 = scmp.lt.s32.totalorder %s22, 0
      %s394 = scalar_select %p393, %s22, 0
      %s395 = smul.addr %s394, 2
      %s396 = scalar_lea.vmem %s2, %s395
      %p397 = scmp.lt.s32.totalorder %s22, 0
      %s398 = scalar_select %p397, %s22, 0
      %s399 = smul.addr %s398, 4
      %s400 = scalar_lea.vmem %s3, %s399
      %p401 = scmp.lt.s32.totalorder %s22, 0
      %s402 = scalar_select %p401, %s22, 0
      %s403 = scalar_lea.vmem %s4, %s402
      %s404 = smul.u32 8, %s23
      %p405 = scmp.lt.s32.totalorder %s21, 1
      %s406 = scalar_select %p405, %s21, 1
      %p407 = scmp.lt.s32.totalorder %s404, 7
      %s408 = scalar_select %p407, %s404, 7
      %p409 = scmp.lt.s32.totalorder %s22, 0
      %s410 = scalar_select %p409, %s22, 0
      %s411 = sadd.s32 %s410, %s408
      %s412 = smul.addr %s406, 8
      %s413 = sadd.s32 %s411, %s412
      %s414 = smul.addr %s413, 8
      %s415 = scalar_lea.vmem %s5, %s414
      %s416 = smul.u32 8, %s23
      %v418 = vld [vmem:[%s369] sm:$0xf]
      %v419 = vld [vmem:[%s369 + $0x4] sm:$0xf]
      %v420 = vld [vmem:[%s369 + $0x8] sm:$0xf]
      %v421 = vld [vmem:[%s369 + $0xc] sm:$0xf]
      %v422 = vld [vmem:[%s369 + $0x10] sm:$0xf]
      %v423 = vld [vmem:[%s369 + $0x14] sm:$0xf]
      %v424 = vld [vmem:[%s369 + $0x18] sm:$0xf]
      %v425 = vld [vmem:[%s369 + $0x1c] sm:$0xf]
      %v426 = vld [vmem:[%s369 + $0x20] sm:$0xf]
      %v427 = vld [vmem:[%s369 + $0x24] sm:$0xf]
      %v428 = vld [vmem:[%s369 + $0x28] sm:$0xf]
      %v429 = vld [vmem:[%s369 + $0x2c] sm:$0xf]
      %v430 = vld [vmem:[%s369 + $0x30] sm:$0xf]
      %v431 = vld [vmem:[%s369 + $0x34] sm:$0xf]
      %v432 = vld [vmem:[%s369 + $0x38] sm:$0xf]
      %v433 = vld [vmem:[%s369 + $0x3c] sm:$0xf]
      %v434 = vld [vmem:[%s388] sm:$0xf]
      %v435 = vld [vmem:[%s400] sm:$0xf]
      %v444 = vunpack.c.l.b16 %v418
      %v445 = vunpack.c.l.b16 %v420
      %v446 = vunpack.c.l.b16 %v422
      %v447 = vunpack.c.l.b16 %v424
      %v448 = vunpack.c.l.b16 %v426
      %v449 = vunpack.c.l.b16 %v428
      %v450 = vunpack.c.l.b16 %v430
      %v451 = vunpack.c.l.b16 %v432
      %v452 = vpack.c.b16 %v444, %v444
      %v453 = vpack.c.b16 %v445, %v445
      %v454 = vpack.c.b16 %v446, %v446
      %v455 = vpack.c.b16 %v447, %v447
      %v456 = vpack.c.b16 %v448, %v448
      %v457 = vpack.c.b16 %v449, %v449
      %v458 = vpack.c.b16 %v450, %v450
      %v459 = vpack.c.b16 %v451, %v451
      %v461 = vshrl.u32 %v452, 16
      %v463 = vrot.slane %v461, 7
      %v464 = vshll.u32 %v452, 16
      %v466 = vor.u32 %v463, %v464
      %v468 = vshrl.u32 %v453, 16
      %v470 = vrot.slane %v468, 7
      %v471 = vshll.u32 %v453, 16
      %v473 = vor.u32 %v470, %v471
      %v475 = vshrl.u32 %v454, 16
      %v477 = vrot.slane %v475, 7
      %v478 = vshll.u32 %v454, 16
      %v480 = vor.u32 %v477, %v478
      %v482 = vshrl.u32 %v455, 16
      %v484 = vrot.slane %v482, 7
      %v485 = vshll.u32 %v455, 16
      %v487 = vor.u32 %v484, %v485
      %v489 = vshrl.u32 %v456, 16
      %v491 = vrot.slane %v489, 7
      %v492 = vshll.u32 %v456, 16
      %v494 = vor.u32 %v491, %v492
      %v496 = vshrl.u32 %v457, 16
      %v498 = vrot.slane %v496, 7
      %v499 = vshll.u32 %v457, 16
      %v501 = vor.u32 %v498, %v499
      %v503 = vshrl.u32 %v458, 16
      %v505 = vrot.slane %v503, 7
      %v506 = vshll.u32 %v458, 16
      %v508 = vor.u32 %v505, %v506
      %v510 = vshrl.u32 %v459, 16
      %v512 = vrot.slane %v510, 7
      %v513 = vshll.u32 %v459, 16
      %v515 = vor.u32 %v512, %v513
      %516 = vrot.lane.b32.xlu0 %v466, 124
      %v517 = vpop.permute.xlu0 %516
      %518 = vrot.lane.b32.xlu0 %v473, 124
      %v519 = vpop.permute.xlu0 %518
      %520 = vrot.lane.b32.xlu0 %v480, 124
      %v521 = vpop.permute.xlu0 %520
      %522 = vrot.lane.b32.xlu0 %v487, 124
      %v523 = vpop.permute.xlu0 %522
      %524 = vrot.lane.b32.xlu0 %v494, 124
      %v525 = vpop.permute.xlu0 %524
      %526 = vrot.lane.b32.xlu0 %v501, 124
      %v527 = vpop.permute.xlu0 %526
      %528 = vrot.lane.b32.xlu0 %v508, 124
      %v529 = vpop.permute.xlu0 %528
      %530 = vrot.lane.b32.xlu0 %v515, 124
      %v531 = vpop.permute.xlu0 %530
      %vm540 = vcmask 1040384
      %vm541 = vsmask.f32 256
      %vm542 = vmand %vm540, %vm541
      %v543 = vsel %vm542, 0, %v517
      %v544 = vsel %vm542, 0, %v519
      %v545 = vsel %vm542, 0, %v521
      %v546 = vsel %vm542, 0, %v523
      %v547 = vsel %vm542, 0, %v525
      %v548 = vsel %vm542, 0, %v527
      %v549 = vsel %vm542, 0, %v529
      %v550 = vsel %vm542, 0, %v531
      %v551 = vld [vmem:[%s396] sm:$0x3]
      %v560 = vunpack.c.l.b16 %v543
      %v561 = vunpack.c.l.b16 %v544
      %v562 = vunpack.c.l.b16 %v545
      %v563 = vunpack.c.l.b16 %v546
      %v564 = vunpack.c.l.b16 %v547
      %v565 = vunpack.c.l.b16 %v548
      %v566 = vunpack.c.l.b16 %v549
      %v567 = vunpack.c.l.b16 %v550
      %v568 = vpack.c.b16 %v561, %v560
      %v569 = vpack.c.b16 %v563, %v562
      %v570 = vpack.c.b16 %v565, %v564
      %v571 = vpack.c.b16 %v567, %v566
      %vm572 = vcmask 31744
      %v574 = vsel %vm572, %v568, 0
      %v577 = vsel %vm572, %v569, 0
      %v580 = vsel %vm572, %v570, 0
      %v583 = vsel %vm572, %v571, 0
      %vm585 = vcmask 1041408
      %v587 = vsel %vm585, %v551, 0
      %589 = vmatprep.subr.bf16.mxu0 0
      %590 = vmatpush1.bf16.msra.mxu0 %v587
      %591 = vmatprep.subr.bf16.mxu0 0
      %592 = vmatpush1.bf16.msra.mxu0 0
      %593 = vmatprep.subr.bf16.mxu0 0
      %594 = vmatpush1.bf16.msra.mxu0 0
      %595 = vmatprep.subr.bf16.mxu0 0
      %596 = vmatpush1.bf16.msra.mxu0 0
      %597 = vmatprep.subr.bf16.mxu0 0
      %598 = vmatpush1.bf16.msra.mxu0 0
      %599 = vmatprep.subr.bf16.mxu0 0
      %600 = vmatpush1.bf16.msra.mxu0 0
      %601 = vmatprep.subr.bf16.mxu0 0
      %602 = vmatpush1.bf16.msra.mxu0 0
      %603 = vmatprep.subr.bf16.mxu0 0
      %604 = vmatpush1.bf16.msra.mxu0 0
      %605 = vmatprep.subr.bf16.mxu0 0
      %606 = vmatpush1.bf16.msra.mxu0 0
      %607 = vmatprep.subr.bf16.mxu0 0
      %608 = vmatpush1.bf16.msra.mxu0 0
      %609 = vmatprep.subr.bf16.mxu0 0
      %610 = vmatpush1.bf16.msra.mxu0 0
      %611 = vmatprep.subr.bf16.mxu0 0
      %612 = vmatpush1.bf16.msra.mxu0 0
      %613 = vmatprep.subr.bf16.mxu0 0
      %614 = vmatpush1.bf16.msra.mxu0 0
      %615 = vmatprep.subr.bf16.mxu0 0
      %616 = vmatpush1.bf16.msra.mxu0 0
      %617 = vmatprep.subr.bf16.mxu0 0
      %618 = vmatpush1.bf16.msra.mxu0 0
      %619 = vmatprep.subr.bf16.mxu0 0
      %620 = vmatpush1.bf16.msra.mxu0 0
      %621 = vmatprep.mubr.bf16.mxu0 0
      %622 = vmatmul.mubr.bf16.gmra.mrb[0].mxu0 %v574
      %v623 = vpop.f32.mrb[0].mxu0
      %v624 = vadd.f32 0.0, %v623
      %v625 = vpop.f32.mrb[0].mxu0
      %v626 = vpop.f32.mrb[0].mxu0
      %v627 = vadd.f32 0.0, %v626
      %v628 = vpop.f32.mrb[0].mxu0
      %629 = vmatprep.mubr.bf16.mxu0 0
      %630 = vmatmul.mubr.bf16.gmra.mrb[0].mxu0 %v577
      %v631 = vpop.f32.mrb[0].mxu0
      %v632 = vadd.f32 0.0, %v631
      %v633 = vpop.f32.mrb[0].mxu0
      %v634 = vpop.f32.mrb[0].mxu0
      %v635 = vadd.f32 0.0, %v634
      %v636 = vpop.f32.mrb[0].mxu0
      %637 = vmatprep.mubr.bf16.mxu0 0
      %638 = vmatmul.mubr.bf16.gmra.mrb[0].mxu0 %v580
      %v639 = vpop.f32.mrb[0].mxu0
      %v640 = vadd.f32 0.0, %v639
      %v641 = vpop.f32.mrb[0].mxu0
      %v642 = vpop.f32.mrb[0].mxu0
      %v643 = vadd.f32 0.0, %v642
      %v644 = vpop.f32.mrb[0].mxu0
      %645 = vmatprep.mubr.bf16.mxu0 0
      %646 = vmatmul.mubr.bf16.gmra.mrb[0].mxu0 %v583
      %v647 = vpop.f32.mrb[0].mxu0
      %v648 = vadd.f32 0.0, %v647
      %v649 = vpop.f32.mrb[0].mxu0
      %v650 = vpop.f32.mrb[0].mxu0
      %v651 = vadd.f32 0.0, %v650
      %v652 = vpop.f32.mrb[0].mxu0
      %653 = vdwg.mxu0
      %v654 = vpack.c.b16 %v445, %v444
      %v655 = vpack.c.b16 %v447, %v446
      %v656 = vpack.c.b16 %v449, %v448
      %v657 = vpack.c.b16 %v451, %v450
      %vm658 = vcmask 64512
      %v660 = vsel %vm658, %v654, 0
      %v663 = vsel %vm658, %v655, 0
      %v666 = vsel %vm658, %v656, 0
      %v669 = vsel %vm658, %v657, 0
      %vm671 = vcmask 1043456
      %v673 = vsel %vm671, %v435, 0
      %675 = vmatprep.subr.bf16.mxu0 0
      %676 = vmatpush1.bf16.msra.mxu0 %v673
      %677 = vmatprep.subr.bf16.mxu0 0
      %678 = vmatpush1.bf16.msra.mxu0 0
      %679 = vmatprep.subr.bf16.mxu0 0
      %680 = vmatpush1.bf16.msra.mxu0 0
      %681 = vmatprep.subr.bf16.mxu0 0
      %682 = vmatpush1.bf16.msra.mxu0 0
      %683 = vmatprep.subr.bf16.mxu0 0
      %684 = vmatpush1.bf16.msra.mxu0 0
      %685 = vmatprep.subr.bf16.mxu0 0
      %686 = vmatpush1.bf16.msra.mxu0 0
      %687 = vmatprep.subr.bf16.mxu0 0
      %688 = vmatpush1.bf16.msra.mxu0 0
      %689 = vmatprep.subr.bf16.mxu0 0
      %690 = vmatpush1.bf16.msra.mxu0 0
      %691 = vmatprep.subr.bf16.mxu0 0
      %692 = vmatpush1.bf16.msra.mxu0 0
      %693 = vmatprep.subr.bf16.mxu0 0
      %694 = vmatpush1.bf16.msra.mxu0 0
      %695 = vmatprep.subr.bf16.mxu0 0
      %696 = vmatpush1.bf16.msra.mxu0 0
      %697 = vmatprep.subr.bf16.mxu0 0
      %698 = vmatpush1.bf16.msra.mxu0 0
      %699 = vmatprep.subr.bf16.mxu0 0
      %700 = vmatpush1.bf16.msra.mxu0 0
      %701 = vmatprep.subr.bf16.mxu0 0
      %702 = vmatpush1.bf16.msra.mxu0 0
      %703 = vmatprep.subr.bf16.mxu0 0
      %704 = vmatpush1.bf16.msra.mxu0 0
      %705 = vmatprep.subr.bf16.mxu0 0
      %706 = vmatpush1.bf16.msra.mxu0 0
      %707 = vmatprep.mubr.bf16.mxu0 0
      %708 = vmatmul.mubr.bf16.gmra.mrb[0].mxu0 %v660
      %v709 = vpop.f32.mrb[0].mxu0
      %v710 = vadd.f32 %v624, %v709
      %v711 = vpop.f32.mrb[0].mxu0
      %v712 = vpop.f32.mrb[0].mxu0
      %v713 = vadd.f32 %v627, %v712
      %v714 = vpop.f32.mrb[0].mxu0
      %715 = vmatprep.mubr.bf16.mxu0 0
      %716 = vmatmul.mubr.bf16.gmra.mrb[0].mxu0 %v663
      %v717 = vpop.f32.mrb[0].mxu0
      %v718 = vadd.f32 %v632, %v717
      %v719 = vpop.f32.mrb[0].mxu0
      %v720 = vpop.f32.mrb[0].mxu0
      %v721 = vadd.f32 %v635, %v720
      %v722 = vpop.f32.mrb[0].mxu0
      %723 = vmatprep.mubr.bf16.mxu0 0
      %724 = vmatmul.mubr.bf16.gmra.mrb[0].mxu0 %v666
      %v725 = vpop.f32.mrb[0].mxu0
      %v726 = vadd.f32 %v640, %v725
      %v727 = vpop.f32.mrb[0].mxu0
      %v728 = vpop.f32.mrb[0].mxu0
      %v729 = vadd.f32 %v643, %v728
      %v730 = vpop.f32.mrb[0].mxu0
      %731 = vmatprep.mubr.bf16.mxu0 0
      %732 = vmatmul.mubr.bf16.gmra.mrb[0].mxu0 %v669
      %v733 = vpop.f32.mrb[0].mxu0
      %v734 = vadd.f32 %v648, %v733
      %v735 = vpop.f32.mrb[0].mxu0
      %v736 = vpop.f32.mrb[0].mxu0
      %v737 = vadd.f32 %v651, %v736
      %v738 = vpop.f32.mrb[0].mxu0
      %739 = vdwg.mxu0
      %s740 = scalar_lea.vmem %s400, 4
      %v741 = vld [vmem:[%s740] sm:$0xf]
      %v750 = vunpack.c.l.b16 %v419
      %v751 = vunpack.c.l.b16 %v421
      %v752 = vunpack.c.l.b16 %v423
      %v753 = vunpack.c.l.b16 %v425
      %v754 = vunpack.c.l.b16 %v427
      %v755 = vunpack.c.l.b16 %v429
      %v756 = vunpack.c.l.b16 %v431
      %v757 = vunpack.c.l.b16 %v433
      %v758 = vpack.c.b16 %v751, %v750
      %v759 = vpack.c.b16 %v753, %v752
      %v760 = vpack.c.b16 %v755, %v754
      %v761 = vpack.c.b16 %v757, %v756
      %v763 = vsel %vm658, %v758, 0
      %v766 = vsel %vm658, %v759, 0
      %v769 = vsel %vm658, %v760, 0
      %v772 = vsel %vm658, %v761, 0
      %v775 = vsel %vm671, %v741, 0
      %777 = vmatprep.subr.bf16.mxu0 0
      %778 = vmatpush1.bf16.msra.mxu0 %v775
      %779 = vmatprep.subr.bf16.mxu0 0
      %780 = vmatpush1.bf16.msra.mxu0 0
      %781 = vmatprep.subr.bf16.mxu0 0
      %782 = vmatpush1.bf16.msra.mxu0 0
      %783 = vmatprep.subr.bf16.mxu0 0
      %784 = vmatpush1.bf16.msra.mxu0 0
      %785 = vmatprep.subr.bf16.mxu0 0
      %786 = vmatpush1.bf16.msra.mxu0 0
      %787 = vmatprep.subr.bf16.mxu0 0
      %788 = vmatpush1.bf16.msra.mxu0 0
      %789 = vmatprep.subr.bf16.mxu0 0
      %790 = vmatpush1.bf16.msra.mxu0 0
      %791 = vmatprep.subr.bf16.mxu0 0
      %792 = vmatpush1.bf16.msra.mxu0 0
      %793 = vmatprep.subr.bf16.mxu0 0
      %794 = vmatpush1.bf16.msra.mxu0 0
      %795 = vmatprep.subr.bf16.mxu0 0
      %796 = vmatpush1.bf16.msra.mxu0 0
      %797 = vmatprep.subr.bf16.mxu0 0
      %798 = vmatpush1.bf16.msra.mxu0 0
      %799 = vmatprep.subr.bf16.mxu0 0
      %800 = vmatpush1.bf16.msra.mxu0 0
      %801 = vmatprep.subr.bf16.mxu0 0
      %802 = vmatpush1.bf16.msra.mxu0 0
      %803 = vmatprep.subr.bf16.mxu0 0
      %804 = vmatpush1.bf16.msra.mxu0 0
      %805 = vmatprep.subr.bf16.mxu0 0
      %806 = vmatpush1.bf16.msra.mxu0 0
      %807 = vmatprep.subr.bf16.mxu0 0
      %808 = vmatpush1.bf16.msra.mxu0 0
      %809 = vmatprep.mubr.bf16.mxu0 0
      %810 = vmatmul.mubr.bf16.gmra.mrb[0].mxu0 %v763
      %v811 = vpop.f32.mrb[0].mxu0
      %v812 = vadd.f32 0.0, %v811
      %v813 = vpop.f32.mrb[0].mxu0
      %v814 = vpop.f32.mrb[0].mxu0
      %v815 = vadd.f32 0.0, %v814
      %v816 = vpop.f32.mrb[0].mxu0
      %817 = vmatprep.mubr.bf16.mxu0 0
      %818 = vmatmul.mubr.bf16.gmra.mrb[0].mxu0 %v766
      %v819 = vpop.f32.mrb[0].mxu0
      %v820 = vadd.f32 0.0, %v819
      %v821 = vpop.f32.mrb[0].mxu0
      %v822 = vpop.f32.mrb[0].mxu0
      %v823 = vadd.f32 0.0, %v822
      %v824 = vpop.f32.mrb[0].mxu0
      %825 = vmatprep.mubr.bf16.mxu0 0
      %826 = vmatmul.mubr.bf16.gmra.mrb[0].mxu0 %v769
      %v827 = vpop.f32.mrb[0].mxu0
      %v828 = vadd.f32 0.0, %v827
      %v829 = vpop.f32.mrb[0].mxu0
      %v830 = vpop.f32.mrb[0].mxu0
      %v831 = vadd.f32 0.0, %v830
      %v832 = vpop.f32.mrb[0].mxu0
      %833 = vmatprep.mubr.bf16.mxu0 0
      %834 = vmatmul.mubr.bf16.gmra.mrb[0].mxu0 %v772
      %v835 = vpop.f32.mrb[0].mxu0
      %v836 = vadd.f32 0.0, %v835
      %v837 = vpop.f32.mrb[0].mxu0
      %v838 = vpop.f32.mrb[0].mxu0
      %v839 = vadd.f32 0.0, %v838
      %v840 = vpop.f32.mrb[0].mxu0
      %841 = vdwg.mxu0
      %v842 = vadd.f32 %v710, %v812
      %v843 = vadd.f32 %v713, %v815
      %v844 = vadd.f32 %v718, %v820
      %v845 = vadd.f32 %v721, %v823
      %v846 = vadd.f32 %v726, %v828
      %v847 = vadd.f32 %v729, %v831
      %v848 = vadd.f32 %v734, %v836
      %v849 = vadd.f32 %v737, %v839
      %v850 = vpack.c.b16 %v750, %v750
      %v851 = vpack.c.b16 %v751, %v751
      %v852 = vpack.c.b16 %v752, %v752
      %v853 = vpack.c.b16 %v753, %v753
      %v854 = vpack.c.b16 %v754, %v754
      %v855 = vpack.c.b16 %v755, %v755
      %v856 = vpack.c.b16 %v756, %v756
      %v857 = vpack.c.b16 %v757, %v757
      %v859 = vshrl.u32 %v850, 16
      %v861 = vrot.slane %v859, 7
      %v862 = vshll.u32 %v850, 16
      %v864 = vor.u32 %v861, %v862
      %v866 = vshrl.u32 %v851, 16
      %v868 = vrot.slane %v866, 7
      %v869 = vshll.u32 %v851, 16
      %v871 = vor.u32 %v868, %v869
      %v873 = vshrl.u32 %v852, 16
      %v875 = vrot.slane %v873, 7
      %v876 = vshll.u32 %v852, 16
      %v878 = vor.u32 %v875, %v876
      %v880 = vshrl.u32 %v853, 16
      %v882 = vrot.slane %v880, 7
      %v883 = vshll.u32 %v853, 16
      %v885 = vor.u32 %v882, %v883
      %v887 = vshrl.u32 %v854, 16
      %v889 = vrot.slane %v887, 7
      %v890 = vshll.u32 %v854, 16
      %v892 = vor.u32 %v889, %v890
      %v894 = vshrl.u32 %v855, 16
      %v896 = vrot.slane %v894, 7
      %v897 = vshll.u32 %v855, 16
      %v899 = vor.u32 %v896, %v897
      %v901 = vshrl.u32 %v856, 16
      %v903 = vrot.slane %v901, 7
      %v904 = vshll.u32 %v856, 16
      %v906 = vor.u32 %v903, %v904
      %v908 = vshrl.u32 %v857, 16
      %v910 = vrot.slane %v908, 7
      %v911 = vshll.u32 %v857, 16
      %v913 = vor.u32 %v910, %v911
      %914 = vrot.lane.b32.xlu0 %v864, 124
      %v915 = vpop.permute.xlu0 %914
      %916 = vrot.lane.b32.xlu0 %v871, 124
      %v917 = vpop.permute.xlu0 %916
      %918 = vrot.lane.b32.xlu0 %v878, 124
      %v919 = vpop.permute.xlu0 %918
      %920 = vrot.lane.b32.xlu0 %v885, 124
      %v921 = vpop.permute.xlu0 %920
      %922 = vrot.lane.b32.xlu0 %v892, 124
      %v923 = vpop.permute.xlu0 %922
      %924 = vrot.lane.b32.xlu0 %v899, 124
      %v925 = vpop.permute.xlu0 %924
      %926 = vrot.lane.b32.xlu0 %v906, 124
      %v927 = vpop.permute.xlu0 %926
      %928 = vrot.lane.b32.xlu0 %v913, 124
      %v929 = vpop.permute.xlu0 %928
      %v938 = vsel %vm542, 0, %v915
      %v939 = vsel %vm542, 0, %v917
      %v940 = vsel %vm542, 0, %v919
      %v941 = vsel %vm542, 0, %v921
      %v942 = vsel %vm542, 0, %v923
      %v943 = vsel %vm542, 0, %v925
      %v944 = vsel %vm542, 0, %v927
      %v945 = vsel %vm542, 0, %v929
      %s946 = scalar_lea.vmem %s396, 2
      %v947 = vld [vmem:[%s946] sm:$0x3]
      %v956 = vunpack.c.l.b16 %v938
      %v957 = vunpack.c.l.b16 %v939
      %v958 = vunpack.c.l.b16 %v940
      %v959 = vunpack.c.l.b16 %v941
      %v960 = vunpack.c.l.b16 %v942
      %v961 = vunpack.c.l.b16 %v943
      %v962 = vunpack.c.l.b16 %v944
      %v963 = vunpack.c.l.b16 %v945
      %v964 = vpack.c.b16 %v957, %v956
      %v965 = vpack.c.b16 %v959, %v958
      %v966 = vpack.c.b16 %v961, %v960
      %v967 = vpack.c.b16 %v963, %v962
      %v969 = vsel %vm572, %v964, 0
      %v972 = vsel %vm572, %v965, 0
      %v975 = vsel %vm572, %v966, 0
      %v978 = vsel %vm572, %v967, 0
      %v981 = vsel %vm585, %v947, 0
      %983 = vmatprep.subr.bf16.mxu0 0
      %984 = vmatpush1.bf16.msra.mxu0 %v981
      %985 = vmatprep.subr.bf16.mxu0 0
      %986 = vmatpush1.bf16.msra.mxu0 0
      %987 = vmatprep.subr.bf16.mxu0 0
      %988 = vmatpush1.bf16.msra.mxu0 0
      %989 = vmatprep.subr.bf16.mxu0 0
      %990 = vmatpush1.bf16.msra.mxu0 0
      %991 = vmatprep.subr.bf16.mxu0 0
      %992 = vmatpush1.bf16.msra.mxu0 0
      %993 = vmatprep.subr.bf16.mxu0 0
      %994 = vmatpush1.bf16.msra.mxu0 0
      %995 = vmatprep.subr.bf16.mxu0 0
      %996 = vmatpush1.bf16.msra.mxu0 0
      %997 = vmatprep.subr.bf16.mxu0 0
      %998 = vmatpush1.bf16.msra.mxu0 0
      %999 = vmatprep.subr.bf16.mxu0 0
      %1000 = vmatpush1.bf16.msra.mxu0 0
      %1001 = vmatprep.subr.bf16.mxu0 0
      %1002 = vmatpush1.bf16.msra.mxu0 0
      %1003 = vmatprep.subr.bf16.mxu0 0
      %1004 = vmatpush1.bf16.msra.mxu0 0
      %1005 = vmatprep.subr.bf16.mxu0 0
      %1006 = vmatpush1.bf16.msra.mxu0 0
      %1007 = vmatprep.subr.bf16.mxu0 0
      %1008 = vmatpush1.bf16.msra.mxu0 0
      %1009 = vmatprep.subr.bf16.mxu0 0
      %1010 = vmatpush1.bf16.msra.mxu0 0
      %1011 = vmatprep.subr.bf16.mxu0 0
      %1012 = vmatpush1.bf16.msra.mxu0 0
      %1013 = vmatprep.subr.bf16.mxu0 0
      %1014 = vmatpush1.bf16.msra.mxu0 0
      %1015 = vmatprep.mubr.bf16.mxu0 0
      %1016 = vmatmul.mubr.bf16.gmra.mrb[0].mxu0 %v969
      %v1017 = vpop.f32.mrb[0].mxu0
      %v1018 = vadd.f32 0.0, %v1017
      %v1019 = vpop.f32.mrb[0].mxu0
      %v1020 = vpop.f32.mrb[0].mxu0
      %v1021 = vadd.f32 0.0, %v1020
      %v1022 = vpop.f32.mrb[0].mxu0
      %1023 = vmatprep.mubr.bf16.mxu0 0
      %1024 = vmatmul.mubr.bf16.gmra.mrb[0].mxu0 %v972
      %v1025 = vpop.f32.mrb[0].mxu0
      %v1026 = vadd.f32 0.0, %v1025
      %v1027 = vpop.f32.mrb[0].mxu0
      %v1028 = vpop.f32.mrb[0].mxu0
      %v1029 = vadd.f32 0.0, %v1028
      %v1030 = vpop.f32.mrb[0].mxu0
      %1031 = vmatprep.mubr.bf16.mxu0 0
      %1032 = vmatmul.mubr.bf16.gmra.mrb[0].mxu0 %v975
      %v1033 = vpop.f32.mrb[0].mxu0
      %v1034 = vadd.f32 0.0, %v1033
      %v1035 = vpop.f32.mrb[0].mxu0
      %v1036 = vpop.f32.mrb[0].mxu0
      %v1037 = vadd.f32 0.0, %v1036
      %v1038 = vpop.f32.mrb[0].mxu0
      %1039 = vmatprep.mubr.bf16.mxu0 0
      %1040 = vmatmul.mubr.bf16.gmra.mrb[0].mxu0 %v978
      %v1041 = vpop.f32.mrb[0].mxu0
      %v1042 = vadd.f32 0.0, %v1041
      %v1043 = vpop.f32.mrb[0].mxu0
      %v1044 = vpop.f32.mrb[0].mxu0
      %v1045 = vadd.f32 0.0, %v1044
      %v1046 = vpop.f32.mrb[0].mxu0
      %1047 = vdwg.mxu0
      %v1048 = vadd.f32 %v842, %v1018
      %v1049 = vadd.f32 %v843, %v1021
      %v1050 = vadd.f32 %v844, %v1026
      %v1051 = vadd.f32 %v845, %v1029
      %v1052 = vadd.f32 %v846, %v1034
      %v1053 = vadd.f32 %v847, %v1037
      %v1054 = vadd.f32 %v848, %v1042
      %v1055 = vadd.f32 %v849, %v1045
      %s1056 = scalar_lea.vmem %s400, 8
      %v1057 = vld [vmem:[%s1056] sm:$0xf]
      %v1059 = vunpack.c.l.b16 %v434
      %v1060 = vpack.c.b16 %v446, %v445
      %v1061 = vpack.c.b16 %v448, %v447
      %v1062 = vpack.c.b16 %v450, %v449
      %v1063 = vpack.c.b16 %v1059, %v451
      %v1065 = vsel %vm658, %v1060, 0
      %v1068 = vsel %vm658, %v1061, 0
      %v1071 = vsel %vm658, %v1062, 0
      %v1074 = vsel %vm658, %v1063, 0
      %v1077 = vsel %vm671, %v1057, 0
      %1079 = vmatprep.subr.bf16.mxu0 0
      %1080 = vmatpush1.bf16.msra.mxu0 %v1077
      %1081 = vmatprep.subr.bf16.mxu0 0
      %1082 = vmatpush1.bf16.msra.mxu0 0
      %1083 = vmatprep.subr.bf16.mxu0 0
      %1084 = vmatpush1.bf16.msra.mxu0 0
      %1085 = vmatprep.subr.bf16.mxu0 0
      %1086 = vmatpush1.bf16.msra.mxu0 0
      %1087 = vmatprep.subr.bf16.mxu0 0
      %1088 = vmatpush1.bf16.msra.mxu0 0
      %1089 = vmatprep.subr.bf16.mxu0 0
      %1090 = vmatpush1.bf16.msra.mxu0 0
      %1091 = vmatprep.subr.bf16.mxu0 0
      %1092 = vmatpush1.bf16.msra.mxu0 0
      %1093 = vmatprep.subr.bf16.mxu0 0
      %1094 = vmatpush1.bf16.msra.mxu0 0
      %1095 = vmatprep.subr.bf16.mxu0 0
      %1096 = vmatpush1.bf16.msra.mxu0 0
      %1097 = vmatprep.subr.bf16.mxu0 0
      %1098 = vmatpush1.bf16.msra.mxu0 0
      %1099 = vmatprep.subr.bf16.mxu0 0
      %1100 = vmatpush1.bf16.msra.mxu0 0
      %1101 = vmatprep.subr.bf16.mxu0 0
      %1102 = vmatpush1.bf16.msra.mxu0 0
      %1103 = vmatprep.subr.bf16.mxu0 0
      %1104 = vmatpush1.bf16.msra.mxu0 0
      %1105 = vmatprep.subr.bf16.mxu0 0
      %1106 = vmatpush1.bf16.msra.mxu0 0
      %1107 = vmatprep.subr.bf16.mxu0 0
      %1108 = vmatpush1.bf16.msra.mxu0 0
      %1109 = vmatprep.subr.bf16.mxu0 0
      %1110 = vmatpush1.bf16.msra.mxu0 0
      %1111 = vmatprep.mubr.bf16.mxu0 0
      %1112 = vmatmul.mubr.bf16.gmra.mrb[0].mxu0 %v1065
      %v1113 = vpop.f32.mrb[0].mxu0
      %v1114 = vadd.f32 0.0, %v1113
      %v1115 = vpop.f32.mrb[0].mxu0
      %v1116 = vpop.f32.mrb[0].mxu0
      %v1117 = vadd.f32 0.0, %v1116
      %v1118 = vpop.f32.mrb[0].mxu0
      %1119 = vmatprep.mubr.bf16.mxu0 0
      %1120 = vmatmul.mubr.bf16.gmra.mrb[0].mxu0 %v1068
      %v1121 = vpop.f32.mrb[0].mxu0
      %v1122 = vadd.f32 0.0, %v1121
      %v1123 = vpop.f32.mrb[0].mxu0
      %v1124 = vpop.f32.mrb[0].mxu0
      %v1125 = vadd.f32 0.0, %v1124
      %v1126 = vpop.f32.mrb[0].mxu0
      %1127 = vmatprep.mubr.bf16.mxu0 0
      %1128 = vmatmul.mubr.bf16.gmra.mrb[0].mxu0 %v1071
      %v1129 = vpop.f32.mrb[0].mxu0
      %v1130 = vadd.f32 0.0, %v1129
      %v1131 = vpop.f32.mrb[0].mxu0
      %v1132 = vpop.f32.mrb[0].mxu0
      %v1133 = vadd.f32 0.0, %v1132
      %v1134 = vpop.f32.mrb[0].mxu0
      %1135 = vmatprep.mubr.bf16.mxu0 0
      %1136 = vmatmul.mubr.bf16.gmra.mrb[0].mxu0 %v1074
      %v1137 = vpop.f32.mrb[0].mxu0
      %v1138 = vadd.f32 0.0, %v1137
      %v1139 = vpop.f32.mrb[0].mxu0
      %v1140 = vpop.f32.mrb[0].mxu0
      %v1141 = vadd.f32 0.0, %v1140
      %v1142 = vpop.f32.mrb[0].mxu0
      %1143 = vdwg.mxu0
      %v1144 = vadd.f32 %v1048, %v1114
      %v1145 = vadd.f32 %v1049, %v1117
      %v1146 = vadd.f32 %v1050, %v1122
      %v1147 = vadd.f32 %v1051, %v1125
      %v1148 = vadd.f32 %v1052, %v1130
      %v1149 = vadd.f32 %v1053, %v1133
      %v1150 = vadd.f32 %v1054, %v1138
      %v1151 = vadd.f32 %v1055, %v1141
      %v1152 = vpack.c.b16 %v1059, %v1059
      %v1154 = vshrl.u32 %v1152, 16
      %v1156 = vrot.slane %v1154, 7
      %v1157 = vshll.u32 %v1152, 16
      %v1159 = vor.u32 %v1156, %v1157
      %1160 = vrot.lane.b32.xlu0 %v1159, 124
      %v1161 = vpop.permute.xlu0 %1160
      %v1163 = vsel %vm542, 0, %v1161
      %s1164 = scalar_lea.vmem %s396, 4
      %v1165 = vld [vmem:[%s1164] sm:$0x3]
      %v1167 = vunpack.c.l.b16 %v1163
      %v1168 = vpack.c.b16 %v562, %v561
      %v1169 = vpack.c.b16 %v564, %v563
      %v1170 = vpack.c.b16 %v566, %v565
      %v1171 = vpack.c.b16 %v1167, %v567
      %v1173 = vsel %vm572, %v1168, 0
      %v1176 = vsel %vm572, %v1169, 0
      %v1179 = vsel %vm572, %v1170, 0
      %v1182 = vsel %vm572, %v1171, 0
      %v1185 = vsel %vm585, %v1165, 0
      %1187 = vmatprep.subr.bf16.mxu0 0
      %1188 = vmatpush1.bf16.msra.mxu0 %v1185
      %1189 = vmatprep.subr.bf16.mxu0 0
      %1190 = vmatpush1.bf16.msra.mxu0 0
      %1191 = vmatprep.subr.bf16.mxu0 0
      %1192 = vmatpush1.bf16.msra.mxu0 0
      %1193 = vmatprep.subr.bf16.mxu0 0
      %1194 = vmatpush1.bf16.msra.mxu0 0
      %1195 = vmatprep.subr.bf16.mxu0 0
      %1196 = vmatpush1.bf16.msra.mxu0 0
      %1197 = vmatprep.subr.bf16.mxu0 0
      %1198 = vmatpush1.bf16.msra.mxu0 0
      %1199 = vmatprep.subr.bf16.mxu0 0
      %1200 = vmatpush1.bf16.msra.mxu0 0
      %1201 = vmatprep.subr.bf16.mxu0 0
      %1202 = vmatpush1.bf16.msra.mxu0 0
      %1203 = vmatprep.subr.bf16.mxu0 0
      %1204 = vmatpush1.bf16.msra.mxu0 0
      %1205 = vmatprep.subr.bf16.mxu0 0
      %1206 = vmatpush1.bf16.msra.mxu0 0
      %1207 = vmatprep.subr.bf16.mxu0 0
      %1208 = vmatpush1.bf16.msra.mxu0 0
      %1209 = vmatprep.subr.bf16.mxu0 0
      %1210 = vmatpush1.bf16.msra.mxu0 0
      %1211 = vmatprep.subr.bf16.mxu0 0
      %1212 = vmatpush1.bf16.msra.mxu0 0
      %1213 = vmatprep.subr.bf16.mxu0 0
      %1214 = vmatpush1.bf16.msra.mxu0 0
      %1215 = vmatprep.subr.bf16.mxu0 0
      %1216 = vmatpush1.bf16.msra.mxu0 0
      %1217 = vmatprep.subr.bf16.mxu0 0
      %1218 = vmatpush1.bf16.msra.mxu0 0
      %1219 = vmatprep.mubr.bf16.mxu0 0
      %1220 = vmatmul.mubr.bf16.gmra.mrb[0].mxu0 %v1173
      %v1221 = vpop.f32.mrb[0].mxu0
      %v1222 = vadd.f32 0.0, %v1221
      %v1223 = vpop.f32.mrb[0].mxu0
      %v1224 = vpop.f32.mrb[0].mxu0
      %v1225 = vadd.f32 0.0, %v1224
      %v1226 = vpop.f32.mrb[0].mxu0
      %1227 = vmatprep.mubr.bf16.mxu0 0
      %1228 = vmatmul.mubr.bf16.gmra.mrb[0].mxu0 %v1176
      %v1229 = vpop.f32.mrb[0].mxu0
      %v1230 = vadd.f32 0.0, %v1229
      %v1231 = vpop.f32.mrb[0].mxu0
      %v1232 = vpop.f32.mrb[0].mxu0
      %v1233 = vadd.f32 0.0, %v1232
      %v1234 = vpop.f32.mrb[0].mxu0
      %1235 = vmatprep.mubr.bf16.mxu0 0
      %1236 = vmatmul.mubr.bf16.gmra.mrb[0].mxu0 %v1179
      %v1237 = vpop.f32.mrb[0].mxu0
      %v1238 = vadd.f32 0.0, %v1237
      %v1239 = vpop.f32.mrb[0].mxu0
      %v1240 = vpop.f32.mrb[0].mxu0
      %v1241 = vadd.f32 0.0, %v1240
      %v1242 = vpop.f32.mrb[0].mxu0
      %1243 = vmatprep.mubr.bf16.mxu0 0
      %1244 = vmatmul.mubr.bf16.gmra.mrb[0].mxu0 %v1182
      %v1245 = vpop.f32.mrb[0].mxu0
      %v1246 = vadd.f32 0.0, %v1245
      %v1247 = vpop.f32.mrb[0].mxu0
      %v1248 = vpop.f32.mrb[0].mxu0
      %v1249 = vadd.f32 0.0, %v1248
      %v1250 = vpop.f32.mrb[0].mxu0
      %1251 = vdwg.mxu0
      %v1252 = vadd.f32 %v1144, %v1222
      %v1253 = vadd.f32 %v1145, %v1225
      %v1254 = vadd.f32 %v1146, %v1230
      %v1255 = vadd.f32 %v1147, %v1233
      %v1256 = vadd.f32 %v1148, %v1238
      %v1257 = vadd.f32 %v1149, %v1241
      %v1258 = vadd.f32 %v1150, %v1246
      %v1259 = vadd.f32 %v1151, %v1249
      %v1260 = vld [vmem:[%s403] sm:$0x1]
      %v1262 = vlaneseq
      %v1263 = vshrl.u32 %v1262, 7
      %v1264 = vsub.s32 0, %v1263
      %v1265 = vrot.slane %v1260, %v1264
      %v1267 = vadd.f32 %v1252, %v1265
      %v1268 = vadd.f32 %v1253, %v1265
      %v1269 = vadd.f32 %v1254, %v1265
      %v1270 = vadd.f32 %v1255, %v1265
      %v1271 = vadd.f32 %v1256, %v1265
      %v1272 = vadd.f32 %v1257, %v1265
      %v1273 = vadd.f32 %v1258, %v1265
      %v1274 = vadd.f32 %v1259, %v1265
      %1275 = vst [vmem:[%s415] sm:$0xff] %v1267
      %1276 = vst [vmem:[%s415 + $0x8] sm:$0xff] %v1268
      %1277 = vst [vmem:[%s415 + $0x10] sm:$0xff] %v1269
      %1278 = vst [vmem:[%s415 + $0x18] sm:$0xff] %v1270
      %1279 = vst [vmem:[%s415 + $0x20] sm:$0xff] %v1271
      %1280 = vst [vmem:[%s415 + $0x28] sm:$0xff] %v1272
      %1281 = vst [vmem:[%s415 + $0x30] sm:$0xff] %v1273
      %1282 = vst [vmem:[%s415 + $0x38] sm:$0xff] %v1274
      %s1283 = smul.u32 8, %s23
      %p1284 = scmp.lt.s32.totalorder %s21, 1
      %s1285 = scalar_select %p1284, %s21, 1
      %p1286 = scmp.lt.s32.totalorder %s1283, 7
      %s1287 = scalar_select %p1286, %s1283, 7
      %p1288 = scmp.lt.s32.totalorder %s22, 0
      %s1289 = scalar_select %p1288, %s22, 0
      %s1290 = sadd.s32 %s1289, %s1287
      %s1291 = smul.addr %s1285, 8
      %s1292 = sadd.s32 %s1290, %s1291
      %s1293 = smul.addr %s1292, 8
      %s1294 = scalar_lea.vmem %s5, %s1293
      // Predicated region
      $region41: #{downsample_block2d.1} parent=39 // pred_check
        %p1295 = pneg %p199
      $region42: #{downsample_block2d.1} parent=39 // pred_check_branch
        %1297 = sbr.rel (%p1295) target = $region44
      $region43: #{downsample_block2d.1} parent=39 // pred_region
        %s1298 = smul.u32 8, %s23
      $region44: #{downsample_block2d.1} parent=39 // pred_fallthru
        _
    $region40: #{downsample_block2d.1} parent=5 // pred_fallthru
      _
    %p1299 = scmp.le.s32.totalorder 2, %s11
    // Predicated region
    $region45: #{downsample_block2d.1} parent=5 // pred_check
      %p1300 = pneg %p1299
    $region46: #{downsample_block2d.1} parent=5 // pred_check_branch
      %1302 = sbr.rel (%p1300) target = $region48
    $region47: #{downsample_block2d.1} parent=5 // pred_region
      %s1303 = ssub.s32 %s11, 2
      // Predicated region
      $region49: #{downsample_block2d.1} parent=47 // pred_check
        %p1304 = pneg %p205
      $region50: #{downsample_block2d.1} parent=47 // pred_check_branch
        %1306 = sbr.rel (%p1304) target = $region52
      $region51: #{downsample_block2d.1} parent=47 // pred_region
        %s1307 = smul.u32 8, %s26
        %p1308 = scmp.lt.s32.totalorder %s24, 1
        %s1309 = scalar_select %p1308, %s24, 1
        %p1310 = scmp.lt.s32.totalorder %s1307, 7
        %s1311 = scalar_select %p1310, %s1307, 7
        %p1312 = scmp.lt.s32.totalorder %s25, 0
        %s1313 = scalar_select %p1312, %s25, 0
        %s1314 = sadd.s32 %s1313, %s1311
        %s1315 = smul.addr %s1309, 8
        %s1316 = sadd.s32 %s1314, %s1315
        %s1317 = smul.addr %s1316, 8
        %s1318 = scalar_lea.vmem %s5, %s1317
      $region52: #{downsample_block2d.1} parent=47 // pred_fallthru
        _
    $region48: #{downsample_block2d.1} parent=5 // pred_fallthru
      _
  $region6: #{downsample_block2d.1} parent=0 // loop_footer
    %s15 = sadd.s32 1, %s11
  $region7: #{downsample_block2d.1} parent=0 // loop_footer_branch
    %10 = sbr.rel target = $region3
  $region8: #{downsample_block2d.1} parent=0 // loop_exit
    _

</llo_original>
